<compile_context>
chip_gen: v5e
topology: v5e:2x2
jax: 0.10.0
libtpu: 0.0.40
codegen_flags: <defaults>
</compile_context>

<pallas_src>
import jax
import jax.numpy as jnp
from jax.experimental import pallas as pl
from jax.experimental.pallas import tpu as pltpu


LANES = 128
SUBLANES = 8
CHUNK = SUBLANES * LANES        # 1024: minimum (8,128) tile granule


def _chip_config(max_itemsize):
    """Per-generation (num_core_slots, rows_per_tile).

    rows_per_tile is sized so each grid step moves >> the ~0.35us fixed
    per-step overhead of DMA while 3 streams x 2 double-buffers of input
    stay comfortably under the per-chip default scoped-VMEM limit.
    """
    try:
        kind = jax.devices()[0].device_kind.lower()
    except Exception:
        kind = ""
    if "v7" in kind:
        slots, rows = 2, 4096      # 2 TCs/chip; 12 MiB f32 input double-buffers
    elif "v6" in kind:
        slots, rows = 1, 4096      # 1 TC; ~92% of HBM roofline
    elif "v5" in kind:
        slots, rows = 1, 2048      # keep well under 16 MiB scoped-VMEM default
    else:
        slots, rows = 1, 2048      # conservative default
    if max_itemsize <= 2:
        rows *= 2                  # bf16/fp8: halve bytes/row -> double rows
    return slots, rows


def _make_kernel(rows_per_tile, blocks_per_core, total_rows, needs_mask):
    """Kernel closure over static tiling parameters."""
    sub_blocks = rows_per_tile // SUBLANES

    def kernel(x_ref, t_ref, lv_ref, out_ref):
        c = pl.program_id(0)       # core slot ("parallel"; megacore on v7x)
        i = pl.program_id(1)       # reduction over blocks ("arbitrary")

        @pl.when(i == 0)
        def _():
            out_ref[...] = jnp.zeros_like(out_ref)

        x = x_ref[...].astype(jnp.float32)
        t = t_ref[...].astype(jnp.float32)
        lv = lv_ref[...].astype(jnp.float32)
        d = x - t
        # 0.5 factored out; the wrapper applies it once to the final sum.
        loss = jnp.exp(-lv) * d * d + lv

        def accum(val):
            # Fold to a vreg-shaped (8,128) partial with pure VPU adds
            # (no cross-lane XLU reduce, no scalar RMW chain).
            out_ref[0] += val.reshape(sub_blocks, SUBLANES, LANES).sum(axis=0)

        if needs_mask:
            blk = c * blocks_per_core + i          # unclamped logical block id
            row_base = blk * rows_per_tile
            is_edge = row_base + rows_per_tile > total_rows

            @pl.when(jnp.logical_not(is_edge))
            def _():                               # fully valid: zero mask cost
                accum(loss)

            @pl.when(is_edge)
            def _():                               # partial tail / clamped dup
                rid = jax.lax.broadcasted_iota(
                    jnp.int32, (rows_per_tile, LANES), 0)
                valid = (row_base + rid) < total_rows
                # Mask only the final loss; TPU select does not propagate
                # NaN/Inf from the unselected (garbage-padding) operand.
                accum(jnp.where(valid, loss, 0.0))
        else:
            accum(loss)

    return kernel


def gaussian_aleatoric_uncertainty_loss(inp, target, log_variance,
                                        loss_weight=1.0):
    """Scalar f32 loss matching the PyTorch module (reduction=mean)."""
    x = jnp.ravel(inp)
    t = jnp.ravel(target)
    lv = jnp.ravel(log_variance)
    n = x.shape[0]
    if n == 0:
        return jnp.float32(0.0)

    n_main = (n // CHUNK) * CHUNK
    total = jnp.float32(0.0)

    # Tail (< 1024 elements) handled with plain jnp in the wrapper; this
    # replaces the old jnp.pad path which materialized full HBM copies of
    # all three input streams before a purely bandwidth-bound kernel.
    if n_main != n:
        xt = x[n_main:].astype(jnp.float32)
        tt = t[n_main:].astype(jnp.float32)
        lt = lv[n_main:].astype(jnp.float32)
        dt = xt - tt
        total = total + jnp.sum(jnp.exp(-lt) * dt * dt + lt)

    if n_main > 0:
        max_itemsize = max(x.dtype.itemsize, t.dtype.itemsize,
                           lv.dtype.itemsize)
        num_core_slots, rows_per_tile = _chip_config(max_itemsize)

        total_rows = n_main // LANES                      # multiple of 8
        rows_per_tile = min(rows_per_tile, total_rows)
        num_blocks = -(-total_rows // rows_per_tile)
        num_core_slots = max(1, min(num_core_slots, num_blocks))
        blocks_per_core = -(-num_blocks // num_core_slots)
        needs_mask = (num_core_slots * blocks_per_core * rows_per_tile
                      ) != total_rows

        # Views only (no HBM copies): flat prefix -> (total_rows, 128).
        x2 = x[:n_main].reshape(total_rows, LANES)
        t2 = t[:n_main].reshape(total_rows, LANES)
        lv2 = lv[:n_main].reshape(total_rows, LANES)

        def in_map(c, i):
            # Clamp so the DMA window stays inside the array; clamped
            # duplicate blocks are fully masked in-kernel (contribute 0).
            blk = jnp.minimum(c * blocks_per_core + i, num_blocks - 1)
            return (blk, 0)

        in_spec = pl.BlockSpec((rows_per_tile, LANES), in_map)
        out_spec = pl.BlockSpec((1, SUBLANES, LANES), lambda c, i: (c, 0, 0))

        kernel = _make_kernel(rows_per_tile, blocks_per_core, total_rows,
                              needs_mask)

        bytes_in = n_main * (x.dtype.itemsize + t.dtype.itemsize
                             + lv.dtype.itemsize)
        cost = pl.CostEstimate(
            flops=6 * n_main,
            transcendentals=n_main,
            bytes_accessed=bytes_in + num_core_slots * SUBLANES * LANES * 4)

        partials = pl.pallas_call(
            kernel,
            out_shape=jax.ShapeDtypeStruct(
                (num_core_slots, SUBLANES, LANES), jnp.float32),
            grid_spec=pltpu.PrefetchScalarGridSpec(
                num_scalar_prefetch=0,
                grid=(num_core_slots, blocks_per_core),
                in_specs=[in_spec, in_spec, in_spec],
                out_specs=out_spec,
            ),
            compiler_params=pltpu.CompilerParams(
                dimension_semantics=("parallel", "arbitrary")),
            cost_estimate=cost,
        )(x2, t2, lv2)

        total = total + jnp.sum(partials)

    # TODO(synk): for N >~ 1e9 a second-level (pairwise) accumulator would
    # tighten agreement with an f64 reference; unnecessary at loss-mean scale.
    return (0.5 * total / jnp.float32(n)) * jnp.float32(loss_weight)


def _reference(inp, target, log_variance, loss_weight=1.0):
    x = jnp.ravel(inp).astype(jnp.float32)
    t = jnp.ravel(target).astype(jnp.float32)
    lv = jnp.ravel(log_variance).astype(jnp.float32)
    loss = 0.5 * jnp.exp(-lv) * jnp.abs(x - t) ** 2 + 0.5 * lv
    return jnp.mean(loss) * loss_weight


if __name__ == "__main__":
    key = jax.random.PRNGKey(0)

    # Case 1: detection-head-like NCHW output, size a multiple of 8*128.
    k1, k2, k3, key = jax.random.split(key, 4)
    shape = (2, 4, 16, 16)
    inp = jax.random.normal(k1, shape, dtype=jnp.float32)
    target = jax.random.normal(k2, shape, dtype=jnp.float32)
    log_var = 0.5 * jax.random.normal(k3, shape, dtype=jnp.float32)
    out = gaussian_aleatoric_uncertainty_loss(inp, target, log_var, 1.0)
    out = jax.block_until_ready(out)
    ref = _reference(inp, target, log_var, 1.0)
    assert jnp.allclose(out, ref, rtol=1e-5, atol=1e-5), (out, ref)

    # Case 2: non-multiple size -> exercises the wrapper tail path.
    k1, k2, k3, key = jax.random.split(key, 4)
    shape2 = (3, 5, 7, 11)
    inp2 = jax.random.normal(k1, shape2, dtype=jnp.float32)
    target2 = jax.random.normal(k2, shape2, dtype=jnp.float32)
    log_var2 = 0.5 * jax.random.normal(k3, shape2, dtype=jnp.float32)
    out2 = gaussian_aleatoric_uncertainty_loss(inp2, target2, log_var2, 2.0)
    out2 = jax.block_until_ready(out2)
    ref2 = _reference(inp2, target2, log_var2, 2.0)
    assert jnp.allclose(out2, ref2, rtol=1e-5, atol=1e-5), (out2, ref2)

    print("KERNEL_OK")
</pallas_src>

<mosaic_0001>
module attributes {stable_mosaic.version = 11 : i64} {
  func.func @kernel(%arg0: i32, %arg1: i32, %arg2: memref<16x128xf32, #tpu.memory_space<vmem>>, %arg3: memref<16x128xf32, #tpu.memory_space<vmem>>, %arg4: memref<16x128xf32, #tpu.memory_space<vmem>>, %arg5: memref<1x8x128xf32, #tpu.memory_space<vmem>>) attributes {dimension_semantics = [#tpu.dimension_semantics<parallel>, #tpu.dimension_semantics<arbitrary>], iteration_bounds = array<i64: 1, 1>, scalar_prefetch = 0 : i64, scratch_operands = 0 : i64, tpu.core_type = #tpu.core_type<tc>, window_params = [{transform_indices = @transform_0, window_bounds = array<i64: 16, 128>}, {transform_indices = @transform_1, window_bounds = array<i64: 16, 128>}, {transform_indices = @transform_2, window_bounds = array<i64: 16, 128>}, {transform_indices = @transform_3, window_bounds = array<i64: 1, 8, 128>}]} {
    %c0_i32 = arith.constant 0 : i32
    %0 = arith.cmpi eq, %arg1, %c0_i32 : i32
    %1 = arith.extui %0 : i1 to i32
    %c0_i32_0 = arith.constant 0 : i32
    %2 = arith.cmpi ne, %1, %c0_i32_0 : i32
    scf.if %2 {
      %cst_13 = arith.constant 0.000000e+00 : f32
      %21 = vector.broadcast %cst_13 : f32 to vector<1x8x128xf32>
      %c0_14 = arith.constant 0 : index
      %c0_15 = arith.constant 0 : index
      %c0_16 = arith.constant 0 : index
      %22 = vector.load %arg5[%c0_14, %c0_15, %c0_16] : memref<1x8x128xf32, #tpu.memory_space<vmem>>, vector<1x8x128xf32>
      tpu.vector_store %arg5[%c0_14, %c0_15, %c0_16], %21 {strides = array<i32>} : memref<1x8x128xf32, #tpu.memory_space<vmem>>, vector<1x8x128xf32>,
    } else {
    }
    %c0 = arith.constant 0 : index
    %c0_1 = arith.constant 0 : index
    %3 = vector.load %arg2[%c0, %c0_1] : memref<16x128xf32, #tpu.memory_space<vmem>>, vector<16x128xf32>
    %c0_2 = arith.constant 0 : index
    %c0_3 = arith.constant 0 : index
    %4 = vector.load %arg3[%c0_2, %c0_3] : memref<16x128xf32, #tpu.memory_space<vmem>>, vector<16x128xf32>
    %c0_4 = arith.constant 0 : index
    %c0_5 = arith.constant 0 : index
    %5 = vector.load %arg4[%c0_4, %c0_5] : memref<16x128xf32, #tpu.memory_space<vmem>>, vector<16x128xf32>
    %6 = arith.subf %3, %4 : vector<16x128xf32>
    %cst = arith.constant 0.000000e+00 : f32
    %7 = vector.broadcast %cst : f32 to vector<16x128xf32>
    %8 = arith.subf %7, %5 : vector<16x128xf32>
    %9 = math.exp %8 : vector<16x128xf32>
    %10 = arith.mulf %9, %6 : vector<16x128xf32>
    %11 = arith.mulf %10, %6 : vector<16x128xf32>
    %12 = arith.addf %11, %5 : vector<16x128xf32>
    %c0_6 = arith.constant 0 : index
    %c0_7 = arith.constant 0 : index
    %c0_8 = arith.constant 0 : index
    %13 = vector.load %arg5[%c0_6, %c0_7, %c0_8] : memref<1x8x128xf32, #tpu.memory_space<vmem>>, vector<1x8x128xf32>
    %14 = vector.shape_cast %13 : vector<1x8x128xf32> to vector<8x128xf32>
    %15 = vector.shape_cast %12 : vector<16x128xf32> to vector<2x8x128xf32>
    %cst_9 = arith.constant dense<0.000000e+00> : vector<8x128xf32>
    %16 = vector.multi_reduction <add>, %15, %cst_9 [0] : vector<2x8x128xf32> to vector<8x128xf32>
    %17 = arith.addf %14, %16 : vector<8x128xf32>
    %c0_10 = arith.constant 0 : index
    %c0_11 = arith.constant 0 : index
    %c0_12 = arith.constant 0 : index
    %18 = vector.load %arg5[%c0_10, %c0_11, %c0_12] : memref<1x8x128xf32, #tpu.memory_space<vmem>>, vector<1x8x128xf32>
    %19 = vector.shape_cast %18 : vector<1x8x128xf32> to vector<8x128xf32>
    %20 = vector.shape_cast %17 : vector<8x128xf32> to vector<1x8x128xf32>
    tpu.vector_store %arg5[%c0_10, %c0_11, %c0_12], %20 {strides = array<i32>} : memref<1x8x128xf32, #tpu.memory_space<vmem>>, vector<1x8x128xf32>,
    return
  }
  func.func @transform_0(%arg0: i32, %arg1: i32) -> (i32, i32) {
    %c1_i32 = arith.constant 1 : i32
    %0 = arith.muli %arg0, %c1_i32 : i32
    %1 = arith.addi %0, %arg1 : i32
    %c0_i32 = arith.constant 0 : i32
    %2 = arith.minsi %1, %c0_i32 : i32
    %c0_i32_0 = arith.constant 0 : i32
    %c0_i32_1 = arith.constant 0 : i32
    return %2, %c0_i32_0 : i32, i32
  }
  func.func @transform_1(%arg0: i32, %arg1: i32) -> (i32, i32) {
    %c1_i32 = arith.constant 1 : i32
    %0 = arith.muli %arg0, %c1_i32 : i32
    %1 = arith.addi %0, %arg1 : i32
    %c0_i32 = arith.constant 0 : i32
    %2 = arith.minsi %1, %c0_i32 : i32
    %c0_i32_0 = arith.constant 0 : i32
    %c0_i32_1 = arith.constant 0 : i32
    return %2, %c0_i32_0 : i32, i32
  }
  func.func @transform_2(%arg0: i32, %arg1: i32) -> (i32, i32) {
    %c1_i32 = arith.constant 1 : i32
    %0 = arith.muli %arg0, %c1_i32 : i32
    %1 = arith.addi %0, %arg1 : i32
    %c0_i32 = arith.constant 0 : i32
    %2 = arith.minsi %1, %c0_i32 : i32
    %c0_i32_0 = arith.constant 0 : i32
    %c0_i32_1 = arith.constant 0 : i32
    return %2, %c0_i32_0 : i32, i32
  }
  func.func @transform_3(%arg0: i32, %arg1: i32) -> (i32, i32, i32) {
    %c0_i32 = arith.constant 0 : i32
    %c0_i32_0 = arith.constant 0 : i32
    %c0_i32_1 = arith.constant 0 : i32
    return %arg0, %c0_i32, %c0_i32_0 : i32, i32, i32
  }
}

</mosaic_0001>

<llo_original>
// kernel: tpu_custom_call.1
$region0: #{tpu_custom_call.1}
  #allocation0 [shape = 'u32[]', space=smem, size = 0x4, offset = 0x4, fixed_abs, tag = 'smem constant byte address 0x4 - core index']
  #allocation1 [shape = 'u32[72,128]{1,0:T(1,128)}', space=vmem, size = 0x9000, scoped, tag = 'internal scratch']
  %s0 = inlined_call_operand.hbm [shape: f32[16,128], index: 0, kind: input, shape index: {}]
  %s1 = inlined_call_operand.hbm [shape: f32[16,128], index: 1, kind: input, shape index: {}]
  %s2 = inlined_call_operand.hbm [shape: f32[16,128], index: 2, kind: input, shape index: {}]
  %s3 = inlined_call_operand.hbm [shape: f32[1,8,128], index: 3, kind: output, shape index: {}]
  %s4 = sld [smem:[#allocation0]]
  $region38: #{tpu_custom_call.1} parent=0
    _
  %s6 = ssub.s32 1, %s4
  %s7 = scalar_select 0, %s6, %s4
  $region1: #{tpu_custom_call.1} parent=0
    #allocation2 [shape = 'u8[8192]{0}', space=vmem, size = 0x2000, scoped, tag = 'input window, operand 0, single buffered']
    #allocation3 [shape = 's32[1]{0}', space=sflag, size = 0x4, scoped, tag = 'scoped memory for tpu_custom_call.1']
    #allocation4 [shape = 's32[1]{0}', space=sflag, size = 0x4, scoped, tag = 'scoped memory for tpu_custom_call.1']
    #allocation5 [shape = 'u8[8192]{0}', space=vmem, size = 0x2000, scoped, tag = 'input window, operand 1, single buffered']
    #allocation6 [shape = 's32[1]{0}', space=sflag, size = 0x4, scoped, tag = 'scoped memory for tpu_custom_call.1']
    #allocation7 [shape = 'u8[8192]{0}', space=vmem, size = 0x2000, scoped, tag = 'input window, operand 2, single buffered']
    #allocation8 [shape = 'u8[4096]{0}', space=vmem, size = 0x1000, scoped, tag = 'output window, operand 0, single buffered']
    %8 = vsyncpa [#allocation3], 0
    %9 = vsyncpa [#allocation6], 0
    %10 = vsyncpa [#allocation4], 0
    // Predicated region
    $region2: #{tpu_custom_call.1} parent=1 // pred_check
      _
    $region3: #{tpu_custom_call.1} parent=1 // pred_check_branch
      %12 = sbr.rel (0) target = $region5
    $region4: #{tpu_custom_call.1} parent=1 // pred_region
      %s13 = sadd.s32 0, 0
      %p14 = scmp.lt.s32.totalorder %s13, 0
      %s15 = scalar_select %p14, %s13, 0
      %s16 = smul.u32 2, %s15
      %18 = vsyncadd [#allocation3], 0
      %s19 = smul.addr %s16, 8
      %s20 = scalar_lea.hbm %s0, %s19
      %s21 = sshll.u32 %s20, 4
      %s22 = int_to_ptr.hbm [resolvable:$true] %s21
      %s23 = sshll.u32 [#allocation2], 4
      %s24 = int_to_ptr.vmem [resolvable:$true] %s23
      %29 = dma.hbm_to_vmem [thread:$0]  %s22, 256, %s24, [#allocation3], 128, 128, 8
    $region5: #{tpu_custom_call.1} parent=1 // pred_fallthru
      _
    // Predicated region
    $region6: #{tpu_custom_call.1} parent=1 // pred_check
      _
    $region7: #{tpu_custom_call.1} parent=1 // pred_check_branch
      %31 = sbr.rel (0) target = $region9
    $region8: #{tpu_custom_call.1} parent=1 // pred_region
      %s32 = sadd.s32 0, 0
      %p33 = scmp.lt.s32.totalorder %s32, 0
      %s34 = scalar_select %p33, %s32, 0
      %s35 = smul.u32 2, %s34
      %37 = vsyncadd [#allocation6], 0
      %s38 = smul.addr %s35, 8
      %s39 = scalar_lea.hbm %s1, %s38
      %s40 = sshll.u32 %s39, 4
      %s41 = int_to_ptr.hbm [resolvable:$true] %s40
      %s42 = sshll.u32 [#allocation5], 4
      %s43 = int_to_ptr.vmem [resolvable:$true] %s42
      %48 = dma.hbm_to_vmem [thread:$0]  %s41, 256, %s43, [#allocation6], 128, 128, 8
    $region9: #{tpu_custom_call.1} parent=1 // pred_fallthru
      _
    // Predicated region
    $region10: #{tpu_custom_call.1} parent=1 // pred_check
      _
    $region11: #{tpu_custom_call.1} parent=1 // pred_check_branch
      %50 = sbr.rel (0) target = $region13
    $region12: #{tpu_custom_call.1} parent=1 // pred_region
      %s51 = sadd.s32 0, 0
      %p52 = scmp.lt.s32.totalorder %s51, 0
      %s53 = scalar_select %p52, %s51, 0
      %s54 = smul.u32 2, %s53
      %56 = vsyncadd [#allocation6], 0
      %s57 = smul.addr %s54, 8
      %s58 = scalar_lea.hbm %s2, %s57
      %s59 = sshll.u32 %s58, 4
      %s60 = int_to_ptr.hbm [resolvable:$true] %s59
      %s61 = sshll.u32 [#allocation7], 4
      %s62 = int_to_ptr.vmem [resolvable:$true] %s61
      %67 = dma.hbm_to_vmem [thread:$0]  %s60, 256, %s62, [#allocation6], 128, 128, 8
    $region13: #{tpu_custom_call.1} parent=1 // pred_fallthru
      _
    // Predicated region
    $region14: #{tpu_custom_call.1} parent=1 // pred_check
      _
    $region15: #{tpu_custom_call.1} parent=1 // pred_check_branch
      %69 = sbr.rel (0) target = $region17
    $region16: #{tpu_custom_call.1} parent=1 // pred_region
      %71 = dma.done [#allocation3], 256
    $region17: #{tpu_custom_call.1} parent=1 // pred_fallthru
      _
    // Predicated region
    $region18: #{tpu_custom_call.1} parent=1 // pred_check
      _
    $region19: #{tpu_custom_call.1} parent=1 // pred_check_branch
      %73 = sbr.rel (0) target = $region21
    $region20: #{tpu_custom_call.1} parent=1 // pred_region
      %75 = dma.done [#allocation6], 256
    $region21: #{tpu_custom_call.1} parent=1 // pred_fallthru
      _
    // Predicated region
    $region22: #{tpu_custom_call.1} parent=1 // pred_check
      _
    $region23: #{tpu_custom_call.1} parent=1 // pred_check_branch
      %77 = sbr.rel (0) target = $region25
    $region24: #{tpu_custom_call.1} parent=1 // pred_region
      %79 = dma.done [#allocation6], 256
    $region25: #{tpu_custom_call.1} parent=1 // pred_fallthru
      _
    %s80 = sadd.s32 0, 0
    %p81 = scmp.lt.s32.totalorder %s80, 0
    %s82 = scalar_select %p81, %s80, 0
    %s83 = smul.u32 2, %s82
    %s84 = sadd.s32 0, 0
    %p85 = scmp.lt.s32.totalorder %s84, 0
    %s86 = scalar_select %p85, %s84, 0
    %s87 = smul.u32 2, %s86
    %s88 = sadd.s32 0, 0
    %p89 = scmp.lt.s32.totalorder %s88, 0
    %s90 = scalar_select %p89, %s88, 0
    %s91 = smul.u32 2, %s90
    %p92 = scmp.eq.s32.totalorder 0, 0
    // Predicated region
    $region26: #{tpu_custom_call.1} parent=1 // pred_check
      %p93 = pneg %p92
    $region27: #{tpu_custom_call.1} parent=1 // pred_check_branch
      %95 = sbr.rel (%p93) target = $region29
    $region28: #{tpu_custom_call.1} parent=1 // pred_region
      %96 = vst [vmem:[#allocation8] sm:$0xff] 0.0
    $region29: #{tpu_custom_call.1} parent=1 // pred_fallthru
      _
    %v97 = vld [vmem:[#allocation2] sm:$0xff]
    %v98 = vld [vmem:[#allocation2 + $0x8] sm:$0xff]
    %v99 = vld [vmem:[#allocation5] sm:$0xff]
    %v100 = vld [vmem:[#allocation5 + $0x8] sm:$0xff]
    %v101 = vld [vmem:[#allocation7] sm:$0xff]
    %v102 = vld [vmem:[#allocation7 + $0x8] sm:$0xff]
    %v103 = vsub.f32 %v97, %v99
    %v104 = vsub.f32 %v98, %v100
    %v105 = vsub.f32 0.0, %v101
    %v106 = vsub.f32 0.0, %v102
    %v107 = vmul.f32 %v105, 1.442695
    %v108 = vpow.pop %v107
    %v109 = vmul.f32 %v106, 1.442695
    %v110 = vpow.pop %v109
    %v111 = vmul.f32 %v108, %v103
    %v112 = vmul.f32 %v110, %v104
    %v113 = vmul.f32 %v111, %v103
    %v114 = vmul.f32 %v112, %v104
    %v115 = vadd.f32 %v113, %v101
    %v116 = vadd.f32 %v114, %v102
    %v117 = vld [vmem:[#allocation8] sm:$0xff]
    %v118 = vadd.f32 %v115, %v116
    %v119 = vadd.f32 %v117, %v118
    %120 = vst [vmem:[#allocation8] sm:$0xff] %v119
    // Predicated region
    $region30: #{tpu_custom_call.1} parent=1 // pred_check
      _
    $region31: #{tpu_custom_call.1} parent=1 // pred_check_branch
      %122 = sbr.rel (0) target = $region33
    $region32: #{tpu_custom_call.1} parent=1 // pred_region
      %124 = vsyncadd [#allocation4], 0
      %s126 = sshll.u32 [#allocation8], 4
      %s127 = int_to_ptr.vmem [resolvable:$true] %s126
      %s128 = sshll.u32 %s3, 4
      %s129 = int_to_ptr.hbm [resolvable:$true] %s128
      %131 = dma.vmem_to_hbm [thread:$0]  %s127, 128, %s129, [#allocation4]
    $region33: #{tpu_custom_call.1} parent=1 // pred_fallthru
      _
    // Predicated region
    $region34: #{tpu_custom_call.1} parent=1 // pred_check
      _
    $region35: #{tpu_custom_call.1} parent=1 // pred_check_branch
      %133 = sbr.rel (0) target = $region37
    $region36: #{tpu_custom_call.1} parent=1 // pred_region
      %135 = dma.done [#allocation4], 128
    $region37: #{tpu_custom_call.1} parent=1 // pred_fallthru
      _
    %136 = vsyncpa [#allocation3], 1
    %137 = vsyncpa [#allocation6], 1
    %138 = vsyncpa [#allocation4], 1

</llo_original>
